<compile_context>
chip_gen: v7x
topology: tpu7x:2x2x1
jax: 0.10.0
libtpu: 0.0.40
codegen_flags: <defaults>
</compile_context>

<pallas_src>
import functools

import numpy as np
import jax
import jax.numpy as jnp
from jax.experimental import pallas as pl
from jax.experimental.pallas import tpu as pltpu

EPS = 1e-5
LANE = 128


def _default_vmem_limit():
    try:
        cap = pltpu.get_tpu_info().vmem_capacity_bytes
    except Exception:
        cap = 128 * 1024 * 1024
    # 64 MiB on 128-MiB parts (v5e/v6e); half the physical capacity on smaller ones (v7x).
    return int(min(64 * 1024 * 1024, max(cap // 2, 16 * 1024 * 1024)))


VMEM_LIMIT = _default_vmem_limit()


def _round_up(x, m):
    return (x + m - 1) // m * m


def _pad2d(x, rows, cols):
    r, c = x.shape
    if r == rows and c == cols:
        return x
    return jnp.pad(x, ((0, rows - r), (0, cols - c)))


def _pick_tm(rows_p, max_tm=512):
    """Large 128-aligned row tile; prefer >= 2 grid steps (pipelining / megacore)."""
    if rows_p <= max_tm:
        for tm in (256, 128):
            if tm < rows_p and rows_p % tm == 0:
                return tm
        return rows_p                      # single full-extent block (tiny inputs)
    for tm in (512, 256, 128):
        if tm <= max_tm and rows_p % tm == 0:
            return tm
    return 128                             # rows will be padded up to a 128 multiple


# ------------------------- Pallas kernels -------------------------

def _mm_bn_kernel(x_ref, w_ref, s_ref, b_ref, o_ref, *, relu):
    acc = jnp.dot(x_ref[...], w_ref[...], preferred_element_type=jnp.float32)
    y = acc * s_ref[...] + b_ref[...]
    if relu:
        y = jnp.maximum(y, 0.0)
    o_ref[...] = y.astype(o_ref.dtype)


def _mm_bn_add_kernel(x_ref, w_ref, s_ref, b_ref, r_ref, o_ref):
    # identity-shortcut variant: relu((x@w)*s + b + residual); residual arrives as bf16.
    acc = jnp.dot(x_ref[...], w_ref[...], preferred_element_type=jnp.float32)
    y = acc * s_ref[...] + b_ref[...] + r_ref[...].astype(jnp.float32)
    o_ref[...] = jnp.maximum(y, 0.0).astype(o_ref.dtype)


def _mm_bn_proj_kernel(x_ref, w_ref, s_ref, b_ref,
                       xs_ref, ws_ref, ss_ref, bs_ref, o_ref):
    # projection-shortcut variant: relu((x@w)*s + b + (xs@ws)*ss + bs)
    acc = jnp.dot(x_ref[...], w_ref[...], preferred_element_type=jnp.float32)
    y = acc * s_ref[...] + b_ref[...]
    acc_s = jnp.dot(xs_ref[...], ws_ref[...], preferred_element_type=jnp.float32)
    y = y + acc_s * ss_ref[...] + bs_ref[...]
    o_ref[...] = jnp.maximum(y, 0.0).astype(o_ref.dtype)


def _conv_taps_bn_kernel(x_ref, w_ref, s_ref, b_ref, o_ref, *, taps):
    # x_ref: (1, Ho + max_dh, Wo + max_dw, K) bf16 (spatially prepared, lane-padded)
    # w_ref: (T, K, Coutp) bf16  (one K x Coutp slab per tap)
    # o_ref: (1, Ho, Wo, Coutp)  out = relu((sum_t x_tap_t @ w_t) * scale + bias)
    # Accumulation lives in a value (vregs / MXU result path); no VMEM RMW per tap.
    _, ho, wo, coutp = o_ref.shape
    k = w_ref.shape[1]

    def tap(i):
        dh, dw = taps[i]
        t = x_ref[0, pl.ds(dh, ho), pl.ds(dw, wo), :]
        # TODO(synk): if Wo is not a multiple of 8 this reshape becomes a Mosaic relayout
        # copy; pad W upstream for 7x7-class stages.
        return t.reshape(ho * wo, k)

    acc = jnp.dot(tap(0), w_ref[0], preferred_element_type=jnp.float32)
    for i in range(1, len(taps)):
        acc = acc + jnp.dot(tap(i), w_ref[i], preferred_element_type=jnp.float32)
    y = jnp.maximum(acc * s_ref[...] + b_ref[...], 0.0)
    o_ref[...] = y.reshape(1, ho, wo, coutp).astype(o_ref.dtype)


# ------------------------- wrappers -------------------------

def fused_matmul_bn(x2d, w, scale, bias, *, relu=True, out_dtype=jnp.bfloat16,
                    residual=None, shortcut=None):
    """y = act((x @ w) * scale + bias [+ residual | + fused shortcut projection]).

    All operands are expected pre-padded: x2d (rows, Kp) bf16, w (Kp, Cp) bf16,
    scale/bias (1, Cp) f32, residual (rows, Cp) bf16,
    shortcut = (xs (rows, Ksp) bf16, ws (Ksp, Cp) bf16, ss, bs).
    Returns (rows, Cp) in out_dtype with the channel padding preserved.
    """
    rows, kp = x2d.shape
    kp_w, cp = w.shape
    assert kp_w == kp and kp % LANE == 0 and cp % LANE == 0
    rows_p = _round_up(rows, 16)
    tm = _pick_tm(rows_p, max_tm=256 if shortcut is not None else 512)
    rows_p = _round_up(rows_p, tm)
    grid = (rows_p // tm,)

    xb = _pad2d(x2d, rows_p, kp)

    in_specs = [
        pl.BlockSpec((tm, kp), lambda i: (i, 0)),
        pl.BlockSpec((kp, cp), lambda i: (0, 0)),
        pl.BlockSpec((1, cp), lambda i: (0, 0)),
        pl.BlockSpec((1, cp), lambda i: (0, 0)),
    ]
    args = [xb, w, scale, bias]
    flops = 2 * rows_p * kp * cp
    nbytes = xb.size * 2 + w.size * 2 + (scale.size + bias.size) * 4
    nbytes += rows_p * cp * np.dtype(out_dtype).itemsize

    if shortcut is not None:
        xs2d, ws, ss, bs = shortcut
        ksp = xs2d.shape[1]
        xsb = _pad2d(xs2d, rows_p, ksp)
        in_specs += [
            pl.BlockSpec((tm, ksp), lambda i: (i, 0)),
            pl.BlockSpec((ksp, cp), lambda i: (0, 0)),
            pl.BlockSpec((1, cp), lambda i: (0, 0)),
            pl.BlockSpec((1, cp), lambda i: (0, 0)),
        ]
        args += [xsb, ws, ss, bs]
        kernel = _mm_bn_proj_kernel
        flops += 2 * rows_p * ksp * cp
        nbytes += xsb.size * 2 + ws.size * 2 + (ss.size + bs.size) * 4
    elif residual is not None:
        rb = _pad2d(residual, rows_p, cp)                     # stays bf16
        in_specs.append(pl.BlockSpec((tm, cp), lambda i: (i, 0)))
        args.append(rb)
        kernel = _mm_bn_add_kernel
        nbytes += rb.size * 2
    else:
        kernel = functools.partial(_mm_bn_kernel, relu=relu)

    out = pl.pallas_call(
        kernel,
        out_shape=jax.ShapeDtypeStruct((rows_p, cp), out_dtype),
        grid=grid,
        in_specs=in_specs,
        out_specs=pl.BlockSpec((tm, cp), lambda i: (i, 0)),
        compiler_params=pltpu.CompilerParams(
            dimension_semantics=("parallel",),
            vmem_limit_bytes=VMEM_LIMIT),
        cost_estimate=pl.CostEstimate(flops=int(flops), transcendentals=0,
                                      bytes_accessed=int(nbytes)),
    )(*args)
    return out if rows_p == rows else out[:rows]


def fused_conv_bn(xp, w_taps, scale, bias, taps, out_hw, *, out_dtype=jnp.bfloat16):
    """Multi-tap conv (3x3 stride-1, or 2x2 over space-to-depth packing) + BN + ReLU."""
    # TODO(synk): for large feature maps (56x56 x 512-ch class stages) tile over output rows
    # with a halo'd input block to bound VMEM on v7x and expose megacore parallelism.
    n, hin, win, k = xp.shape
    t, k2, coutp = w_taps.shape
    assert k2 == k and k % LANE == 0 and coutp % LANE == 0
    ho, wo = out_hw
    return pl.pallas_call(
        functools.partial(_conv_taps_bn_kernel, taps=taps),
        out_shape=jax.ShapeDtypeStruct((n, ho, wo, coutp), out_dtype),
        grid=(n,),
        in_specs=[
            pl.BlockSpec((1, hin, win, k), lambda i: (i, 0, 0, 0)),
            pl.BlockSpec((t, k, coutp), lambda i: (0, 0, 0)),
            pl.BlockSpec((1, coutp), lambda i: (0, 0)),
            pl.BlockSpec((1, coutp), lambda i: (0, 0)),
        ],
        out_specs=pl.BlockSpec((1, ho, wo, coutp), lambda i: (i, 0, 0, 0)),
        compiler_params=pltpu.CompilerParams(
            dimension_semantics=("parallel",),
            vmem_limit_bytes=VMEM_LIMIT),
        cost_estimate=pl.CostEstimate(
            flops=int(2 * n * ho * wo * t * k * coutp),
            transcendentals=0,
            bytes_accessed=int(xp.size * 2 + w_taps.size * 2
                               + n * ho * wo * coutp * np.dtype(out_dtype).itemsize)),
    )(xp, w_taps, scale, bias)


# ------------------------- plain-JAX glue -------------------------

def fold_bn(bn):
    gamma, beta, mean, var = bn
    scale = gamma / jnp.sqrt(var + EPS)
    bias = beta - mean * scale
    return scale, bias


def _pad_vec(v, cp):
    return _pad2d(v.astype(jnp.float32).reshape(1, -1), 1, cp)


def _space_to_depth2(x):
    """Zero-pad by 1 and pack 2x2 spatial phases into channels (for stride-2 3x3 conv)."""
    n, h, w, c = x.shape
    ho = (h - 1) // 2 + 1
    wo = (w - 1) // 2 + 1
    hp, wp = 2 * (ho + 1), 2 * (wo + 1)
    xp = jnp.pad(x, ((0, 0), (1, hp - h - 1), (1, wp - w - 1), (0, 0)))
    xp = xp.reshape(n, ho + 1, 2, wo + 1, 2, c)
    xp = jnp.transpose(xp, (0, 1, 3, 2, 4, 5)).reshape(n, ho + 1, wo + 1, 4 * c)
    return xp, ho, wo


def prepare_params(params, stride):
    """Fold BN and transpose/pad/cast all weights once (hoisted out of the iters loop)."""
    assert stride in (1, 2)  # TODO(synk): strides > 2 would need more space-to-depth phases
    width, in_planes = params["conv1_w"].shape[0], params["conv1_w"].shape[1]
    cexp = params["conv3_w"].shape[0]
    cin_p = _round_up(in_planes, LANE)
    wid_p = _round_up(width, LANE)
    cexp_p = _round_up(cexp, LANE)
    p = {"stride": stride, "cin_p": cin_p, "wid_p": wid_p, "cexp_p": cexp_p, "cexp": cexp}

    s1, b1 = fold_bn(params["bn1"])
    p["w1"] = _pad2d(params["conv1_w"][:, :, 0, 0].T, cin_p, wid_p).astype(jnp.bfloat16)
    p["s1"], p["b1"] = _pad_vec(s1, wid_p), _pad_vec(b1, wid_p)

    s2, b2 = fold_bn(params["bn2"])
    p["s2"], p["b2"] = _pad_vec(s2, wid_p), _pad_vec(b2, wid_p)
    w2 = jnp.transpose(params["conv2_w"], (2, 3, 1, 0))          # (3, 3, Cin, Cout)
    if stride == 1:
        w2 = jnp.pad(w2, ((0, 0), (0, 0), (0, wid_p - width), (0, wid_p - width)))
        p["w2"] = w2.reshape(9, wid_p, wid_p).astype(jnp.bfloat16)
        p["taps"] = tuple((dh, dw) for dh in range(3) for dw in range(3))
    else:
        # Remap the 3x3/stride-2 conv to a 2x2-tap conv over space-to-depth(2) input:
        # W2[bh, bw, (ph, pw, ci), co] = W[2bh+ph, 2bw+pw, ci, co]  (zero when tap >= 3).
        w2 = jnp.pad(w2, ((0, 1), (0, 1), (0, wid_p - width), (0, wid_p - width)))
        w2 = w2.reshape(2, 2, 2, 2, wid_p, wid_p)                 # (bh, ph, bw, pw, ci, co)
        w2 = jnp.transpose(w2, (0, 2, 1, 3, 4, 5))                # (bh, bw, ph, pw, ci, co)
        p["w2"] = w2.reshape(4, 4 * wid_p, wid_p).astype(jnp.bfloat16)
        p["taps"] = ((0, 0), (0, 1), (1, 0), (1, 1))

    s3, b3 = fold_bn(params["bn3"])
    p["w3"] = _pad2d(params["conv3_w"][:, :, 0, 0].T, wid_p, cexp_p).astype(jnp.bfloat16)
    p["s3"], p["b3"] = _pad_vec(s3, cexp_p), _pad_vec(b3, cexp_p)

    if "sc_w" in params:
        ss, bs = fold_bn(params["sc_bn"])
        p["ws"] = _pad2d(params["sc_w"][:, :, 0, 0].T, cin_p, cexp_p).astype(jnp.bfloat16)
        p["ss"], p["bs"] = _pad_vec(ss, cexp_p), _pad_vec(bs, cexp_p)
    return p


def _bottleneck_once(x, p):
    """x: (N, H, W, Cin_p) bf16, lane-padded (pad channels are zero).
    Returns (N, Ho, Wo, Cexp_p) bf16, lane-padded (pad channels stay zero)."""
    n, h, w, cin_p = x.shape
    stride, wid_p, cexp_p = p["stride"], p["wid_p"], p["cexp_p"]

    # conv1 (1x1) + bn1 + relu
    h1 = fused_matmul_bn(x.reshape(n * h * w, cin_p), p["w1"], p["s1"], p["b1"])
    h1 = h1.reshape(n, h, w, wid_p)

    # conv2 (3x3, pad=1, stride) + bn2 + relu -- multi-tap matmul kernel, no HBM im2col,
    # stride-2 handled via space-to-depth packing (no wasted dense FLOPs).
    if stride == 1:
        xp = jnp.pad(h1, ((0, 0), (1, 1), (1, 1), (0, 0)))
        ho, wo = h, w
    else:
        xp, ho, wo = _space_to_depth2(h1)
    h2 = fused_conv_bn(xp, p["w2"], p["s2"], p["b2"], p["taps"], (ho, wo))
    rows = n * ho * wo

    # conv3 (1x1) + bn3 + shortcut + residual add + relu in one fused kernel (bf16 out).
    x_sc = x[:, ::stride, ::stride, :] if stride > 1 else x
    if "ws" in p:
        out = fused_matmul_bn(h2.reshape(rows, wid_p), p["w3"], p["s3"], p["b3"],
                              shortcut=(x_sc.reshape(rows, cin_p),
                                        p["ws"], p["ss"], p["bs"]))
    else:
        out = fused_matmul_bn(h2.reshape(rows, wid_p), p["w3"], p["s3"], p["b3"],
                              residual=x_sc.reshape(rows, cexp_p))
    return out.reshape(n, ho, wo, cexp_p)


def bottleneck_forward(x_nchw, params, stride, iters=1):
    """Matches PyTorch FoldBottleneck.forward (BN in inference form)."""
    # TODO(synk): BatchNorm is folded into inference-form scale/bias; PyTorch train-mode
    # batch statistics are not reproduced.
    p = prepare_params(params, stride)
    n, cin, h, w = x_nchw.shape
    x = jnp.transpose(x_nchw, (0, 2, 3, 1))                       # NCHW -> NHWC
    x = jnp.pad(x, ((0, 0), (0, 0), (0, 0), (0, p["cin_p"] - cin))).astype(jnp.bfloat16)
    for _ in range(iters):
        x = _bottleneck_once(x, p)
    # Single channel-slice + f32 cast + NCHW transpose after the last iteration.
    return jnp.transpose(x[..., :p["cexp"]].astype(jnp.float32), (0, 3, 1, 2))


# ------------------------- deterministic param init -------------------------

def init_params(key, in_planes, planes, wider=1, stride=1):
    width = planes * wider
    cexp = 4 * planes
    ks = jax.random.split(key, 8)

    def conv_w(k, cout, cin, kh, kw):
        return 0.1 * jax.random.normal(k, (cout, cin, kh, kw), jnp.float32)

    def bn_p(k, c):
        k1, k2, k3, k4 = jax.random.split(k, 4)
        gamma = 1.0 + 0.1 * jax.random.normal(k1, (c,), jnp.float32)
        beta = 0.1 * jax.random.normal(k2, (c,), jnp.float32)
        mean = 0.1 * jax.random.normal(k3, (c,), jnp.float32)
        var = 1.0 + 0.1 * jnp.abs(jax.random.normal(k4, (c,), jnp.float32))
        return (gamma, beta, mean, var)

    params = {
        "conv1_w": conv_w(ks[0], width, in_planes, 1, 1),
        "bn1": bn_p(ks[1], width),
        "conv2_w": conv_w(ks[2], width, width, 3, 3),
        "bn2": bn_p(ks[3], width),
        "conv3_w": conv_w(ks[4], cexp, width, 1, 1),
        "bn3": bn_p(ks[5], cexp),
    }
    if stride != 1 or in_planes != cexp:
        params["sc_w"] = conv_w(ks[6], cexp, in_planes, 1, 1)
        params["sc_bn"] = bn_p(ks[7], cexp)
    return params


# ------------------------- pure-JAX reference (for validation) -------------------------

def ref_forward(x_nchw, params, stride, iters=1):
    def bn(y, p):
        g, b, m, v = p
        g, b, m, v = (t[None, :, None, None] for t in (g, b, m, v))
        return (y - m) / jnp.sqrt(v + EPS) * g + b

    def conv(y, w, s, pad):
        return jax.lax.conv_general_dilated(
            y, w, (s, s), [(pad, pad), (pad, pad)],
            dimension_numbers=("NCHW", "OIHW", "NCHW"),
            precision=jax.lax.Precision.HIGHEST)

    x = x_nchw
    for _ in range(iters):
        x_i = x
        out = jax.nn.relu(bn(conv(x, params["conv1_w"], 1, 0), params["bn1"]))
        out = jax.nn.relu(bn(conv(out, params["conv2_w"], stride, 1), params["bn2"]))
        out = bn(conv(out, params["conv3_w"], 1, 0), params["bn3"])
        if "sc_w" in params:
            sc = bn(conv(x_i, params["sc_w"], stride, 0), params["sc_bn"])
        else:
            sc = x_i
        x = jax.nn.relu(out + sc)
    return x


if __name__ == "__main__":
    key = jax.random.PRNGKey(0)
    kx, kp, kx2, kp2 = jax.random.split(key, 4)

    # Config 1: downsample block (projection shortcut, stride 2), iters=1.
    in_planes, planes, wider, stride = 4, 4, 1, 2
    x = jax.random.normal(kx, (2, in_planes, 16, 16), jnp.float32)   # NCHW like PyTorch
    params = init_params(kp, in_planes, planes, wider, stride)
    out = jax.block_until_ready(bottleneck_forward(x, params, stride, iters=1))
    ref = jax.block_until_ready(ref_forward(x, params, stride, iters=1))
    assert out.shape == ref.shape == (2, 16, 8, 8), out.shape
    err = float(jnp.max(jnp.abs(out - ref)))
    assert jnp.allclose(out, ref, atol=6e-2, rtol=5e-2), err

    # Config 2: identity shortcut, block folded twice (iters=2).
    in_planes2, planes2, stride2 = 16, 4, 1
    x2 = jax.random.normal(kx2, (2, in_planes2, 8, 8), jnp.float32)
    params2 = init_params(kp2, in_planes2, planes2, 1, stride2)
    out2 = jax.block_until_ready(bottleneck_forward(x2, params2, stride2, iters=2))
    ref2 = jax.block_until_ready(ref_forward(x2, params2, stride2, iters=2))
    assert out2.shape == ref2.shape == (2, 16, 8, 8), out2.shape
    err2 = float(jnp.max(jnp.abs(out2 - ref2)))
    assert jnp.allclose(out2, ref2, atol=6e-2, rtol=5e-2), err2

    print("KERNEL_OK")
</pallas_src>

<mosaic_0001>
module attributes {stable_mosaic.version = 11 : i64} {
  func.func @_mm_bn_kernel(%arg0: i32, %arg1: memref<256x128xbf16, #tpu.memory_space<vmem>>, %arg2: memref<128x128xbf16, #tpu.memory_space<vmem>>, %arg3: memref<1x128xf32, #tpu.memory_space<vmem>>, %arg4: memref<1x128xf32, #tpu.memory_space<vmem>>, %arg5: memref<256x128xbf16, #tpu.memory_space<vmem>>) attributes {dimension_semantics = [#tpu.dimension_semantics<parallel>], iteration_bounds = array<i64: 2>, scalar_prefetch = 0 : i64, scratch_operands = 0 : i64, tpu.core_type = #tpu.core_type<tc>, window_params = [{transform_indices = @transform_0, window_bounds = array<i64: 256, 128>}, {pipeline_mode = #tpu.pipeline_mode<synchronous>, transform_indices = @transform_1, window_bounds = array<i64: 128, 128>}, {pipeline_mode = #tpu.pipeline_mode<synchronous>, transform_indices = @transform_2, window_bounds = array<i64: 1, 128>}, {pipeline_mode = #tpu.pipeline_mode<synchronous>, transform_indices = @transform_3, window_bounds = array<i64: 1, 128>}, {transform_indices = @transform_4, window_bounds = array<i64: 256, 128>}]} {
    %c0 = arith.constant 0 : index
    %c0_0 = arith.constant 0 : index
    %0 = vector.load %arg1[%c0, %c0_0] : memref<256x128xbf16, #tpu.memory_space<vmem>>, vector<256x128xbf16>
    %c0_1 = arith.constant 0 : index
    %c0_2 = arith.constant 0 : index
    %1 = vector.load %arg2[%c0_1, %c0_2] : memref<128x128xbf16, #tpu.memory_space<vmem>>, vector<128x128xbf16>
    %cst = arith.constant dense<0.000000e+00> : vector<256x128xf32>
    %2 = tpu.matmul %0, %1, %cst {dimension_numbers = #tpu.dot_dimension_numbers<[1], [0], [0], [1], [0, 0, 1, 1], [], []>} : vector<256x128xbf16>, vector<128x128xbf16>, vector<256x128xf32> -> vector<256x128xf32>
    %c0_3 = arith.constant 0 : index
    %c0_4 = arith.constant 0 : index
    %3 = vector.load %arg3[%c0_3, %c0_4] : memref<1x128xf32, #tpu.memory_space<vmem>>, vector<1x128xf32>
    %4 = vector.broadcast %3 : vector<1x128xf32> to vector<256x128xf32>
    %5 = arith.mulf %2, %4 : vector<256x128xf32>
    %c0_5 = arith.constant 0 : index
    %c0_6 = arith.constant 0 : index
    %6 = vector.load %arg4[%c0_5, %c0_6] : memref<1x128xf32, #tpu.memory_space<vmem>>, vector<1x128xf32>
    %7 = vector.broadcast %6 : vector<1x128xf32> to vector<256x128xf32>
    %8 = arith.addf %5, %7 : vector<256x128xf32>
    %cst_7 = arith.constant 0.000000e+00 : f32
    %9 = vector.broadcast %cst_7 : f32 to vector<256x128xf32>
    %10 = arith.maximumf %8, %9 : vector<256x128xf32>
    %11 = arith.truncf %10 : vector<256x128xf32> to vector<256x128xbf16>
    %c0_8 = arith.constant 0 : index
    %c0_9 = arith.constant 0 : index
    %12 = vector.load %arg5[%c0_8, %c0_9] : memref<256x128xbf16, #tpu.memory_space<vmem>>, vector<256x128xbf16>
    tpu.vector_store %arg5[%c0_8, %c0_9], %11 {strides = array<i32>} : memref<256x128xbf16, #tpu.memory_space<vmem>>, vector<256x128xbf16>,
    return
  }
  func.func @transform_0(%arg0: i32) -> (i32, i32) {
    %c0_i32 = arith.constant 0 : i32
    %c0_i32_0 = arith.constant 0 : i32
    return %arg0, %c0_i32 : i32, i32
  }
  func.func @transform_1(%arg0: i32) -> (i32, i32) {
    %c0_i32 = arith.constant 0 : i32
    %c0_i32_0 = arith.constant 0 : i32
    %c0_i32_1 = arith.constant 0 : i32
    return %c0_i32, %c0_i32_0 : i32, i32
  }
  func.func @transform_2(%arg0: i32) -> (i32, i32) {
    %c0_i32 = arith.constant 0 : i32
    %c0_i32_0 = arith.constant 0 : i32
    %c0_i32_1 = arith.constant 0 : i32
    return %c0_i32, %c0_i32_0 : i32, i32
  }
  func.func @transform_3(%arg0: i32) -> (i32, i32) {
    %c0_i32 = arith.constant 0 : i32
    %c0_i32_0 = arith.constant 0 : i32
    %c0_i32_1 = arith.constant 0 : i32
    return %c0_i32, %c0_i32_0 : i32, i32
  }
  func.func @transform_4(%arg0: i32) -> (i32, i32) {
    %c0_i32 = arith.constant 0 : i32
    %c0_i32_0 = arith.constant 0 : i32
    return %arg0, %c0_i32 : i32, i32
  }
}

</mosaic_0001>

<llo_original>
// kernel: tpu_custom_call.1
$region0: #{tpu_custom_call.1}
  #allocation0 [shape = 'u32[]', space=smem, size = 0x4, offset = 0x4, fixed_abs, tag = 'smem constant byte address 0x4 - core index']
  #allocation1 [shape = 'u32[144,128]{1,0:T(1,128)}', space=vmem, size = 0x12000, scoped, tag = 'internal scratch']
  %s0 = inlined_call_operand.hbm [shape: bf16[512,128], index: 0, kind: input, shape index: {}]
  %s1 = inlined_call_operand.hbm [shape: bf16[128,128], index: 1, kind: input, shape index: {}]
  %s2 = inlined_call_operand.hbm [shape: f32[1,128], index: 2, kind: input, shape index: {}]
  %s3 = inlined_call_operand.hbm [shape: f32[1,128], index: 3, kind: input, shape index: {}]
  %s4 = inlined_call_operand.hbm [shape: bf16[512,128], index: 4, kind: output, shape index: {}]
  %s5 = sld [smem:[#allocation0]]
  $region65: #{tpu_custom_call.1} parent=0
    _
  %s7 = ssub.s32 1, %s5
  %s8 = scalar_select 0, %s7, %s5
  $region1: #{tpu_custom_call.1} parent=0
    #allocation2 [shape = 'u8[131072]{0}', space=vmem, size = 0x20000, scoped, tag = 'input window, operand 0']
    #allocation3 [shape = 's32[2]{0}', space=sflag, size = 0x8, scoped, tag = 'scoped memory for tpu_custom_call.1']
    #allocation4 [shape = 's32[2]{0}', space=sflag, size = 0x8, scoped, tag = 'scoped memory for tpu_custom_call.1']
    #allocation5 [shape = 'u8[32768]{0}', space=vmem, size = 0x8000, scoped, tag = 'input window, operand 1, single buffered']
    #allocation6 [shape = 's32[1]{0}', space=sflag, size = 0x4, scoped, tag = 'scoped memory for tpu_custom_call.1']
    #allocation7 [shape = 'u8[512]{0}', space=vmem, size = 0x400, scoped, tag = 'input window, operand 2, single buffered']
    #allocation8 [shape = 'u8[512]{0}', space=vmem, size = 0x400, scoped, tag = 'input window, operand 3, single buffered']
    #allocation9 [shape = 's32[1]{0}', space=sflag, size = 0x4, scoped, tag = 'scoped memory for tpu_custom_call.1']
    #allocation10 [shape = 'u8[131072]{0}', space=vmem, size = 0x20000, scoped, tag = 'output window, operand 0']
    %9 = vsyncpa [#allocation3], 0
    %s10 = scalar_lea.sflag [#allocation3], 1
    %11 = vsyncpa %s10, 0
    %12 = vsyncpa [#allocation6], 0
    %13 = vsyncpa [#allocation9], 0
    %14 = vsyncpa [#allocation4], 0
    %s15 = scalar_lea.sflag [#allocation4], 1
    %16 = vsyncpa %s15, 0
    loop: start=0, step=1, limit=4
    $region2: #{tpu_custom_call.1} parent=1 // loop_pre_header
      _
    $region3: #{tpu_custom_call.1} parent=1 // loop_header
      %s18 = sphi 0, %s22
      %p19 = scmp.ge.s32.totalorder %s18, 4
      %s28 = sphi 0, %s30
      %s31 = sphi 0, %s28
      %s32 = sphi 0, %s31
      %s48 = sphi 0, %s32
      %s52 = sphi 0, %s52
      %s54 = sphi 0, %s52
      %s55 = sphi 0, %s54
      %s69 = sphi 0, %s55
      %s73 = sphi 0, %s73
      %s75 = sphi 0, %s73
      %s76 = sphi 0, %s75
      %s90 = sphi 0, %s76
      %s94 = sphi 0, %s94
      %s96 = sphi 0, %s94
      %s97 = sphi 0, %s96
      %s111 = sphi 0, %s97
      %s117 = sphi 0, %s119
      %s120 = sphi 0, %s117
      %s121 = sphi 0, %s120
      %s137 = sphi 0, %s121
    $region4: #{tpu_custom_call.1} parent=1 // loop_header_branch
      %21 = sbr.rel (%p19) target = $region8
    $region5: #{tpu_custom_call.1} parent=1 // loop_body
      %s23 = ssub.s32 %s18, 1
      %s24 = ssub.s32 %s18, 2
      %s25 = sadd.s32 %s18, 1
      %s26 = ssub.s32 %s18, %s25
      %p27 = scmp.eq.s32.totalorder %s26, 0
      %s29 = sadd.s32 %s28, 1
      %s30 = scalar_select %p27, %s28, %s29
      %p33 = pneg %p27
      %p34 = scmp.eq.s32.totalorder %s18, 1
      %p35 = por %p33, %p34
      %p36 = scmp.ne.s32.totalorder %s28, %s31
      %p37 = scmp.eq.s32.totalorder %s18, 0
      %p38 = por %p36, %p37
      %p39 = scmp.ne.s32.totalorder %s28, %s31
      %p40 = scmp.eq.s32.totalorder %s23, 1
      %p41 = por %p39, %p40
      %p42 = scmp.ne.s32.totalorder %s31, %s32
      %p43 = scmp.eq.s32.totalorder %s23, 0
      %p44 = por %p42, %p43
      %p45 = scmp.ne.s32.totalorder %s31, %s32
      %p46 = scmp.eq.s32.totalorder %s24, 1
      %p47 = por %p45, %p46
      %p49 = scmp.ne.s32.totalorder %s32, %s48
      %p50 = scmp.eq.s32.totalorder %s24, 0
      %p51 = por %p49, %p50
      %s53 = sadd.s32 %s52, 1
      %p56 = scmp.eq.s32.totalorder %s18, 1
      %p57 = scmp.ne.s32.totalorder %s52, %s54
      %p58 = scmp.eq.s32.totalorder %s18, 0
      %p59 = por %p57, %p58
      %p60 = scmp.ne.s32.totalorder %s52, %s54
      %p61 = scmp.eq.s32.totalorder %s23, 1
      %p62 = por %p60, %p61
      %p63 = scmp.ne.s32.totalorder %s54, %s55
      %p64 = scmp.eq.s32.totalorder %s23, 0
      %p65 = por %p63, %p64
      %p66 = scmp.ne.s32.totalorder %s54, %s55
      %p67 = scmp.eq.s32.totalorder %s24, 1
      %p68 = por %p66, %p67
      %p70 = scmp.ne.s32.totalorder %s55, %s69
      %p71 = scmp.eq.s32.totalorder %s24, 0
      %p72 = por %p70, %p71
      %s74 = sadd.s32 %s73, 1
      %p77 = scmp.eq.s32.totalorder %s18, 1
      %p78 = scmp.ne.s32.totalorder %s73, %s75
      %p79 = scmp.eq.s32.totalorder %s18, 0
      %p80 = por %p78, %p79
      %p81 = scmp.ne.s32.totalorder %s73, %s75
      %p82 = scmp.eq.s32.totalorder %s23, 1
      %p83 = por %p81, %p82
      %p84 = scmp.ne.s32.totalorder %s75, %s76
      %p85 = scmp.eq.s32.totalorder %s23, 0
      %p86 = por %p84, %p85
      %p87 = scmp.ne.s32.totalorder %s75, %s76
      %p88 = scmp.eq.s32.totalorder %s24, 1
      %p89 = por %p87, %p88
      %p91 = scmp.ne.s32.totalorder %s76, %s90
      %p92 = scmp.eq.s32.totalorder %s24, 0
      %p93 = por %p91, %p92
      %s95 = sadd.s32 %s94, 1
      %p98 = scmp.eq.s32.totalorder %s18, 1
      %p99 = scmp.ne.s32.totalorder %s94, %s96
      %p100 = scmp.eq.s32.totalorder %s18, 0
      %p101 = por %p99, %p100
      %p102 = scmp.ne.s32.totalorder %s94, %s96
      %p103 = scmp.eq.s32.totalorder %s23, 1
      %p104 = por %p102, %p103
      %p105 = scmp.ne.s32.totalorder %s96, %s97
      %p106 = scmp.eq.s32.totalorder %s23, 0
      %p107 = por %p105, %p106
      %p108 = scmp.ne.s32.totalorder %s96, %s97
      %p109 = scmp.eq.s32.totalorder %s24, 1
      %p110 = por %p108, %p109
      %p112 = scmp.ne.s32.totalorder %s97, %s111
      %p113 = scmp.eq.s32.totalorder %s24, 0
      %p114 = por %p112, %p113
      %s115 = ssub.s32 %s18, %s25
      %p116 = scmp.eq.s32.totalorder %s115, 0
      %s118 = sadd.s32 %s117, 1
      %s119 = scalar_select %p116, %s117, %s118
      %p122 = pneg %p116
      %p123 = scmp.eq.s32.totalorder %s18, 1
      %p124 = por %p122, %p123
      %p125 = scmp.ne.s32.totalorder %s117, %s120
      %p126 = scmp.eq.s32.totalorder %s18, 0
      %p127 = por %p125, %p126
      %p128 = scmp.ne.s32.totalorder %s117, %s120
      %p129 = scmp.eq.s32.totalorder %s23, 1
      %p130 = por %p128, %p129
      %p131 = scmp.ne.s32.totalorder %s120, %s121
      %p132 = scmp.eq.s32.totalorder %s23, 0
      %p133 = por %p131, %p132
      %p134 = scmp.ne.s32.totalorder %s120, %s121
      %p135 = scmp.eq.s32.totalorder %s24, 1
      %p136 = por %p134, %p135
      %p138 = scmp.ne.s32.totalorder %s121, %s137
      %p139 = scmp.eq.s32.totalorder %s24, 0
      %p140 = por %p138, %p139
      %p141 = scmp.le.s32.totalorder 1, %s18
      %p142 = scmp.lt.s32.totalorder %s18, 3
      %p143 = pnand %p141, %p142
      %p144 = pneg %p143
      // Predicated region
      $region9: #{tpu_custom_call.1} parent=5 // pred_check
        _
      $region10: #{tpu_custom_call.1} parent=5 // pred_check_branch
        %146 = sbr.rel (%p143) target = $region12
      $region11: #{tpu_custom_call.1} parent=5 // pred_region
        %s147 = ssub.s32 %s18, 1
        // Predicated region
        $region13: #{tpu_custom_call.1} parent=11 // pred_check
          %p148 = pneg %p65
        $region14: #{tpu_custom_call.1} parent=11 // pred_check_branch
          %150 = sbr.rel (%p148) target = $region16
        $region15: #{tpu_custom_call.1} parent=11 // pred_region
          %s152 = ssub.s32 1024, 1024
          %153 = vsyncadd [#allocation6], %s152
          %s154 = sshll.u32 [#allocation5], 4
          %s155 = int_to_ptr.vmem [resolvable:$true] %s154
          %160 = dma.hbm_to_vmem [thread:$0]  %s1, 1024, %s155, [#allocation6], 64, 64, 4
        $region16: #{tpu_custom_call.1} parent=11 // pred_fallthru
          _
        // Predicated region
        $region17: #{tpu_custom_call.1} parent=11 // pred_check
          %p161 = pneg %p86
        $region18: #{tpu_custom_call.1} parent=11 // pred_check_branch
          %163 = sbr.rel (%p161) target = $region20
        $region19: #{tpu_custom_call.1} parent=11 // pred_region
          %s165 = ssub.s32 16, 16
          %166 = vsyncadd [#allocation6], %s165
          %s168 = sshll.u32 [#allocation7], 4
          %s169 = int_to_ptr.vmem [resolvable:$true] %s168
          %171 = dma.hbm_to_vmem [thread:$0]  %s2, 16, %s169, [#allocation6]
        $region20: #{tpu_custom_call.1} parent=11 // pred_fallthru
          _
        // Predicated region
        $region21: #{tpu_custom_call.1} parent=11 // pred_check
          %p172 = pneg %p107
        $region22: #{tpu_custom_call.1} parent=11 // pred_check_branch
          %174 = sbr.rel (%p172) target = $region24
        $region23: #{tpu_custom_call.1} parent=11 // pred_region
          %s176 = ssub.s32 16, 16
          %177 = vsyncadd [#allocation9], %s176
          %s179 = sshll.u32 [#allocation8], 4
          %s180 = int_to_ptr.vmem [resolvable:$true] %s179
          %182 = dma.hbm_to_vmem [thread:$0]  %s3, 16, %s180, [#allocation9]
        $region24: #{tpu_custom_call.1} parent=11 // pred_fallthru
          _
      $region12: #{tpu_custom_call.1} parent=5 // pred_fallthru
        _
      %p183 = scmp.lt.s32.totalorder %s18, 2
      // Predicated region
      $region25: #{tpu_custom_call.1} parent=5 // pred_check
        %p184 = pneg %p183
      $region26: #{tpu_custom_call.1} parent=5 // pred_check_branch
        %186 = sbr.rel (%p184) target = $region28
      $region27: #{tpu_custom_call.1} parent=5 // pred_region
        // Predicated region
        $region29: #{tpu_custom_call.1} parent=27 // pred_check
          %p187 = pneg %p38
        $region30: #{tpu_custom_call.1} parent=27 // pred_check_branch
          %189 = sbr.rel (%p187) target = $region32
        $region31: #{tpu_custom_call.1} parent=27 // pred_region
          %s190 = sand.u32 %s28, 1
          %s191 = scalar_lea.sflag [#allocation3], %s190
          %s192 = sand.u32 %s28, 1
          %s193 = smul.addr %s192, 128
          %s194 = scalar_lea.vmem [#allocation2], %s193
          %s195 = smul.u32 32, %s18
          %s197 = ssub.s32 2048, 2048
          %198 = vsyncadd %s191, %s197
          %s199 = smul.addr %s195, 64
          %s200 = scalar_lea.hbm %s0, %s199
          %s201 = sshll.u32 %s194, 4
          %s202 = int_to_ptr.vmem [resolvable:$true] %s201
          %207 = dma.hbm_to_vmem [thread:$0]  %s200, 2048, %s202, %s191, 64, 64, 4
        $region32: #{tpu_custom_call.1} parent=27 // pred_fallthru
          _
      $region28: #{tpu_custom_call.1} parent=5 // pred_fallthru
        _
      %p208 = scmp.le.s32.totalorder 1, %s18
      %p209 = scmp.lt.s32.totalorder %s18, 3
      %p210 = pnand %p208, %p209
      %p211 = pneg %p210
      // Predicated region
      $region33: #{tpu_custom_call.1} parent=5 // pred_check
        _
      $region34: #{tpu_custom_call.1} parent=5 // pred_check_branch
        %213 = sbr.rel (%p210) target = $region36
      $region35: #{tpu_custom_call.1} parent=5 // pred_region
        %s214 = ssub.s32 %s18, 1
        %s215 = sand.u32 %s31, 1
        %s216 = scalar_lea.sflag [#allocation3], %s215
        %s217 = sand.u32 %s31, 1
        %s218 = smul.addr %s217, 128
        %s219 = scalar_lea.vmem [#allocation2], %s218
        // Predicated region
        $region37: #{tpu_custom_call.1} parent=35 // pred_check
          %p220 = pneg %p44
        $region38: #{tpu_custom_call.1} parent=35 // pred_check_branch
          %222 = sbr.rel (%p220) target = $region40
        $region39: #{tpu_custom_call.1} parent=35 // pred_region
          %223 = dma.done %s216, 2048
        $region40: #{tpu_custom_call.1} parent=35 // pred_fallthru
          _
        // Predicated region
        $region41: #{tpu_custom_call.1} parent=35 // pred_check
          %p224 = pneg %p65
        $region42: #{tpu_custom_call.1} parent=35 // pred_check_branch
          %226 = sbr.rel (%p224) target = $region44
        $region43: #{tpu_custom_call.1} parent=35 // pred_region
          %227 = dma.done [#allocation6], 1024
        $region44: #{tpu_custom_call.1} parent=35 // pred_fallthru
          _
        // Predicated region
        $region45: #{tpu_custom_call.1} parent=35 // pred_check
          %p228 = pneg %p86
        $region46: #{tpu_custom_call.1} parent=35 // pred_check_branch
          %230 = sbr.rel (%p228) target = $region48
        $region47: #{tpu_custom_call.1} parent=35 // pred_region
          %231 = dma.done [#allocation6], 16
        $region48: #{tpu_custom_call.1} parent=35 // pred_fallthru
          _
        // Predicated region
        $region49: #{tpu_custom_call.1} parent=35 // pred_check
          %p232 = pneg %p107
        $region50: #{tpu_custom_call.1} parent=35 // pred_check_branch
          %234 = sbr.rel (%p232) target = $region52
        $region51: #{tpu_custom_call.1} parent=35 // pred_region
          %235 = dma.done [#allocation9], 16
        $region52: #{tpu_custom_call.1} parent=35 // pred_fallthru
          _
        %s236 = sand.u32 %s31, 1
        %s237 = scalar_lea.sflag [#allocation3], %s236
        %s238 = sand.u32 %s31, 1
        %s239 = smul.addr %s238, 128
        %s240 = scalar_lea.vmem [#allocation2], %s239
        %p241 = pneg %p44
        %p242 = pneg %p41
        %p243 = pneg %p65
        %p244 = pneg %p62
        %p245 = pneg %p86
        %p246 = pneg %p83
        %p247 = pneg %p107
        %p248 = pneg %p104
        %p249 = pneg %p133
        %p250 = pneg %p130
        %s251 = sand.u32 %s120, 1
        %s252 = scalar_lea.sflag [#allocation4], %s251
        %s253 = sand.u32 %s120, 1
        %s254 = smul.addr %s253, 128
        %s255 = scalar_lea.vmem [#allocation10], %s254
        %s256 = smul.u32 32, %s23
        %s257 = smul.u32 32, %s23
        %v259 = vld [vmem:[%s219] sm:$0xf]
        %v260 = vld [vmem:[%s219 + $0x4] sm:$0xf]
        %v261 = vld [vmem:[%s219 + $0x8] sm:$0xf]
        %v262 = vld [vmem:[%s219 + $0xc] sm:$0xf]
        %v263 = vld [vmem:[%s219 + $0x10] sm:$0xf]
        %v264 = vld [vmem:[%s219 + $0x14] sm:$0xf]
        %v265 = vld [vmem:[%s219 + $0x18] sm:$0xf]
        %v266 = vld [vmem:[%s219 + $0x1c] sm:$0xf]
        %v267 = vld [vmem:[%s219 + $0x20] sm:$0xf]
        %v268 = vld [vmem:[%s219 + $0x24] sm:$0xf]
        %v269 = vld [vmem:[%s219 + $0x28] sm:$0xf]
        %v270 = vld [vmem:[%s219 + $0x2c] sm:$0xf]
        %v271 = vld [vmem:[%s219 + $0x30] sm:$0xf]
        %v272 = vld [vmem:[%s219 + $0x34] sm:$0xf]
        %v273 = vld [vmem:[%s219 + $0x38] sm:$0xf]
        %v274 = vld [vmem:[%s219 + $0x3c] sm:$0xf]
        %v275 = vld [vmem:[%s219 + $0x40] sm:$0xf]
        %v276 = vld [vmem:[%s219 + $0x44] sm:$0xf]
        %v277 = vld [vmem:[%s219 + $0x48] sm:$0xf]
        %v278 = vld [vmem:[%s219 + $0x4c] sm:$0xf]
        %v279 = vld [vmem:[%s219 + $0x50] sm:$0xf]
        %v280 = vld [vmem:[%s219 + $0x54] sm:$0xf]
        %v281 = vld [vmem:[%s219 + $0x58] sm:$0xf]
        %v282 = vld [vmem:[%s219 + $0x5c] sm:$0xf]
        %v283 = vld [vmem:[%s219 + $0x60] sm:$0xf]
        %v284 = vld [vmem:[%s219 + $0x64] sm:$0xf]
        %v285 = vld [vmem:[%s219 + $0x68] sm:$0xf]
        %v286 = vld [vmem:[%s219 + $0x6c] sm:$0xf]
        %v287 = vld [vmem:[%s219 + $0x70] sm:$0xf]
        %v288 = vld [vmem:[%s219 + $0x74] sm:$0xf]
        %v289 = vld [vmem:[%s219 + $0x78] sm:$0xf]
        %v290 = vld [vmem:[%s219 + $0x7c] sm:$0xf]
        %v291 = vld [vmem:[#allocation5] sm:$0xf]
        %v292 = vld [vmem:[#allocation5 + $0x4] sm:$0xf]
        %v293 = vld [vmem:[#allocation5 + $0x8] sm:$0xf]
        %v294 = vld [vmem:[#allocation5 + $0xc] sm:$0xf]
        %v295 = vld [vmem:[#allocation5 + $0x10] sm:$0xf]
        %v296 = vld [vmem:[#allocation5 + $0x14] sm:$0xf]
        %v297 = vld [vmem:[#allocation5 + $0x18] sm:$0xf]
        %v298 = vld [vmem:[#allocation5 + $0x1c] sm:$0xf]
        %v299 = vld [vmem:[#allocation5 + $0x20] sm:$0xf]
        %v300 = vld [vmem:[#allocation5 + $0x24] sm:$0xf]
        %v301 = vld [vmem:[#allocation5 + $0x28] sm:$0xf]
        %v302 = vld [vmem:[#allocation5 + $0x2c] sm:$0xf]
        %v303 = vld [vmem:[#allocation5 + $0x30] sm:$0xf]
        %v304 = vld [vmem:[#allocation5 + $0x34] sm:$0xf]
        %v305 = vld [vmem:[#allocation5 + $0x38] sm:$0xf]
        %v306 = vld [vmem:[#allocation5 + $0x3c] sm:$0xf]
        %v339 = vunpack.c.l.b16 %v259
        %v340 = vunpack.c.l.b16 %v260
        %v341 = vunpack.c.l.b16 %v261
        %v342 = vunpack.c.l.b16 %v262
        %v343 = vunpack.c.l.b16 %v263
        %v344 = vunpack.c.l.b16 %v264
        %v345 = vunpack.c.l.b16 %v265
        %v346 = vunpack.c.l.b16 %v266
        %v347 = vunpack.c.l.b16 %v267
        %v348 = vunpack.c.l.b16 %v268
        %v349 = vunpack.c.l.b16 %v269
        %v350 = vunpack.c.l.b16 %v270
        %v351 = vunpack.c.l.b16 %v271
        %v352 = vunpack.c.l.b16 %v272
        %v353 = vunpack.c.l.b16 %v273
        %v354 = vunpack.c.l.b16 %v274
        %v355 = vunpack.c.l.b16 %v275
        %v356 = vunpack.c.l.b16 %v276
        %v357 = vunpack.c.l.b16 %v277
        %v358 = vunpack.c.l.b16 %v278
        %v359 = vunpack.c.l.b16 %v279
        %v360 = vunpack.c.l.b16 %v280
        %v361 = vunpack.c.l.b16 %v281
        %v362 = vunpack.c.l.b16 %v282
        %v363 = vunpack.c.l.b16 %v283
        %v364 = vunpack.c.l.b16 %v284
        %v365 = vunpack.c.l.b16 %v285
        %v366 = vunpack.c.l.b16 %v286
        %v367 = vunpack.c.l.b16 %v287
        %v368 = vunpack.c.l.b16 %v288
        %v369 = vunpack.c.l.b16 %v289
        %v370 = vunpack.c.l.b16 %v290
        %v371 = vpack.c.b16 %v340, %v339
        %v372 = vpack.c.b16 %v342, %v341
        %v373 = vpack.c.b16 %v344, %v343
        %v374 = vpack.c.b16 %v346, %v345
        %v375 = vpack.c.b16 %v348, %v347
        %v376 = vpack.c.b16 %v350, %v349
        %v377 = vpack.c.b16 %v352, %v351
        %v378 = vpack.c.b16 %v354, %v353
        %v379 = vpack.c.b16 %v356, %v355
        %v380 = vpack.c.b16 %v358, %v357
        %v381 = vpack.c.b16 %v360, %v359
        %v382 = vpack.c.b16 %v362, %v361
        %v383 = vpack.c.b16 %v364, %v363
        %v384 = vpack.c.b16 %v366, %v365
        %v385 = vpack.c.b16 %v368, %v367
        %v386 = vpack.c.b16 %v370, %v369
        %v419 = vunpack.c.l.b16 %v291
        %v420 = vunpack.c.l.b16 %v292
        %v421 = vunpack.c.l.b16 %v293
        %v422 = vunpack.c.l.b16 %v294
        %v423 = vunpack.c.l.b16 %v295
        %v424 = vunpack.c.l.b16 %v296
        %v425 = vunpack.c.l.b16 %v297
        %v426 = vunpack.c.l.b16 %v298
        %v427 = vunpack.c.l.b16 %v299
        %v428 = vunpack.c.l.b16 %v300
        %v429 = vunpack.c.l.b16 %v301
        %v430 = vunpack.c.l.b16 %v302
        %v431 = vunpack.c.l.b16 %v303
        %v432 = vunpack.c.l.b16 %v304
        %v433 = vunpack.c.l.b16 %v305
        %v434 = vunpack.c.l.b16 %v306
        %v435 = vpack.c.b16 %v420, %v419
        %v436 = vpack.c.b16 %v422, %v421
        %v437 = vpack.c.b16 %v424, %v423
        %v438 = vpack.c.b16 %v426, %v425
        %v439 = vpack.c.b16 %v428, %v427
        %v440 = vpack.c.b16 %v430, %v429
        %v441 = vpack.c.b16 %v432, %v431
        %v442 = vpack.c.b16 %v434, %v433
        %451 = vmatprep.subr.bf16.mxu0 0
        %452 = vmatpush1.bf16.msra.mxu0 %v435
        %453 = vmatprep.subr.bf16.mxu0 0
        %454 = vmatpush1.bf16.msra.mxu0 %v436
        %455 = vmatprep.subr.bf16.mxu0 0
        %456 = vmatpush1.bf16.msra.mxu0 %v437
        %457 = vmatprep.subr.bf16.mxu0 0
        %458 = vmatpush1.bf16.msra.mxu0 %v438
        %459 = vmatprep.subr.bf16.mxu0 0
        %460 = vmatpush1.bf16.msra.mxu0 %v439
        %461 = vmatprep.subr.bf16.mxu0 0
        %462 = vmatpush1.bf16.msra.mxu0 %v440
        %463 = vmatprep.subr.bf16.mxu0 0
        %464 = vmatpush1.bf16.msra.mxu0 %v441
        %465 = vmatprep.subr.bf16.mxu0 0
        %466 = vmatpush1.bf16.msra.mxu0 %v442
        %467 = vmatprep.subr.bf16.mxu0 0
        %468 = vmatpush1.bf16.msra.mxu0 0
        %469 = vmatprep.subr.bf16.mxu0 0
        %470 = vmatpush1.bf16.msra.mxu0 0
        %471 = vmatprep.subr.bf16.mxu0 0
        %472 = vmatpush1.bf16.msra.mxu0 0
        %473 = vmatprep.subr.bf16.mxu0 0
        %474 = vmatpush1.bf16.msra.mxu0 0
        %475 = vmatprep.subr.bf16.mxu0 0
        %476 = vmatpush1.bf16.msra.mxu0 0
        %477 = vmatprep.subr.bf16.mxu0 0
        %478 = vmatpush1.bf16.msra.mxu0 0
        %479 = vmatprep.subr.bf16.mxu0 0
        %480 = vmatpush1.bf16.msra.mxu0 0
        %481 = vmatprep.subr.bf16.mxu0 0
        %482 = vmatpush1.bf16.msra.mxu0 0
        %483 = vmatprep.mubr.bf16.mxu0 0
        %484 = vmatmul.mubr.bf16.gmra.mrb[0].mxu0 %v371
        %v485 = vpop.f32.mrb[0].mxu0
        %v486 = vadd.f32 0.0, %v485
        %v487 = vpop.f32.mrb[0].mxu0
        %v488 = vpop.f32.mrb[0].mxu0
        %v489 = vadd.f32 0.0, %v488
        %v490 = vpop.f32.mrb[0].mxu0
        %491 = vmatprep.mubr.bf16.mxu0 0
        %492 = vmatmul.mubr.bf16.gmra.mrb[0].mxu0 %v372
        %v493 = vpop.f32.mrb[0].mxu0
        %v494 = vadd.f32 0.0, %v493
        %v495 = vpop.f32.mrb[0].mxu0
        %v496 = vpop.f32.mrb[0].mxu0
        %v497 = vadd.f32 0.0, %v496
        %v498 = vpop.f32.mrb[0].mxu0
        %499 = vmatprep.mubr.bf16.mxu0 0
        %500 = vmatmul.mubr.bf16.gmra.mrb[0].mxu0 %v373
        %v501 = vpop.f32.mrb[0].mxu0
        %v502 = vadd.f32 0.0, %v501
        %v503 = vpop.f32.mrb[0].mxu0
        %v504 = vpop.f32.mrb[0].mxu0
        %v505 = vadd.f32 0.0, %v504
        %v506 = vpop.f32.mrb[0].mxu0
        %507 = vmatprep.mubr.bf16.mxu0 0
        %508 = vmatmul.mubr.bf16.gmra.mrb[0].mxu0 %v374
        %v509 = vpop.f32.mrb[0].mxu0
        %v510 = vadd.f32 0.0, %v509
        %v511 = vpop.f32.mrb[0].mxu0
        %v512 = vpop.f32.mrb[0].mxu0
        %v513 = vadd.f32 0.0, %v512
        %v514 = vpop.f32.mrb[0].mxu0
        %515 = vmatprep.mubr.bf16.mxu0 0
        %516 = vmatmul.mubr.bf16.gmra.mrb[0].mxu0 %v375
        %v517 = vpop.f32.mrb[0].mxu0
        %v518 = vadd.f32 0.0, %v517
        %v519 = vpop.f32.mrb[0].mxu0
        %v520 = vpop.f32.mrb[0].mxu0
        %v521 = vadd.f32 0.0, %v520
        %v522 = vpop.f32.mrb[0].mxu0
        %523 = vmatprep.mubr.bf16.mxu0 0
        %524 = vmatmul.mubr.bf16.gmra.mrb[0].mxu0 %v376
        %v525 = vpop.f32.mrb[0].mxu0
        %v526 = vadd.f32 0.0, %v525
        %v527 = vpop.f32.mrb[0].mxu0
        %v528 = vpop.f32.mrb[0].mxu0
        %v529 = vadd.f32 0.0, %v528
        %v530 = vpop.f32.mrb[0].mxu0
        %531 = vmatprep.mubr.bf16.mxu0 0
        %532 = vmatmul.mubr.bf16.gmra.mrb[0].mxu0 %v377
        %v533 = vpop.f32.mrb[0].mxu0
        %v534 = vadd.f32 0.0, %v533
        %v535 = vpop.f32.mrb[0].mxu0
        %v536 = vpop.f32.mrb[0].mxu0
        %v537 = vadd.f32 0.0, %v536
        %v538 = vpop.f32.mrb[0].mxu0
        %539 = vmatprep.mubr.bf16.mxu0 0
        %540 = vmatmul.mubr.bf16.gmra.mrb[0].mxu0 %v378
        %v541 = vpop.f32.mrb[0].mxu0
        %v542 = vadd.f32 0.0, %v541
        %v543 = vpop.f32.mrb[0].mxu0
        %v544 = vpop.f32.mrb[0].mxu0
        %v545 = vadd.f32 0.0, %v544
        %v546 = vpop.f32.mrb[0].mxu0
        %547 = vmatprep.mubr.bf16.mxu0 0
        %548 = vmatmul.mubr.bf16.gmra.mrb[0].mxu0 %v379
        %v549 = vpop.f32.mrb[0].mxu0
        %v550 = vadd.f32 0.0, %v549
        %v551 = vpop.f32.mrb[0].mxu0
        %v552 = vpop.f32.mrb[0].mxu0
        %v553 = vadd.f32 0.0, %v552
        %v554 = vpop.f32.mrb[0].mxu0
        %555 = vmatprep.mubr.bf16.mxu0 0
        %556 = vmatmul.mubr.bf16.gmra.mrb[0].mxu0 %v380
        %v557 = vpop.f32.mrb[0].mxu0
        %v558 = vadd.f32 0.0, %v557
        %v559 = vpop.f32.mrb[0].mxu0
        %v560 = vpop.f32.mrb[0].mxu0
        %v561 = vadd.f32 0.0, %v560
        %v562 = vpop.f32.mrb[0].mxu0
        %563 = vmatprep.mubr.bf16.mxu0 0
        %564 = vmatmul.mubr.bf16.gmra.mrb[0].mxu0 %v381
        %v565 = vpop.f32.mrb[0].mxu0
        %v566 = vadd.f32 0.0, %v565
        %v567 = vpop.f32.mrb[0].mxu0
        %v568 = vpop.f32.mrb[0].mxu0
        %v569 = vadd.f32 0.0, %v568
        %v570 = vpop.f32.mrb[0].mxu0
        %571 = vmatprep.mubr.bf16.mxu0 0
        %572 = vmatmul.mubr.bf16.gmra.mrb[0].mxu0 %v382
        %v573 = vpop.f32.mrb[0].mxu0
        %v574 = vadd.f32 0.0, %v573
        %v575 = vpop.f32.mrb[0].mxu0
        %v576 = vpop.f32.mrb[0].mxu0
        %v577 = vadd.f32 0.0, %v576
        %v578 = vpop.f32.mrb[0].mxu0
        %579 = vmatprep.mubr.bf16.mxu0 0
        %580 = vmatmul.mubr.bf16.gmra.mrb[0].mxu0 %v383
        %v581 = vpop.f32.mrb[0].mxu0
        %v582 = vadd.f32 0.0, %v581
        %v583 = vpop.f32.mrb[0].mxu0
        %v584 = vpop.f32.mrb[0].mxu0
        %v585 = vadd.f32 0.0, %v584
        %v586 = vpop.f32.mrb[0].mxu0
        %587 = vmatprep.mubr.bf16.mxu0 0
        %588 = vmatmul.mubr.bf16.gmra.mrb[0].mxu0 %v384
        %v589 = vpop.f32.mrb[0].mxu0
        %v590 = vadd.f32 0.0, %v589
        %v591 = vpop.f32.mrb[0].mxu0
        %v592 = vpop.f32.mrb[0].mxu0
        %v593 = vadd.f32 0.0, %v592
        %v594 = vpop.f32.mrb[0].mxu0
        %595 = vmatprep.mubr.bf16.mxu0 0
        %596 = vmatmul.mubr.bf16.gmra.mrb[0].mxu0 %v385
        %v597 = vpop.f32.mrb[0].mxu0
        %v598 = vadd.f32 0.0, %v597
        %v599 = vpop.f32.mrb[0].mxu0
        %v600 = vpop.f32.mrb[0].mxu0
        %v601 = vadd.f32 0.0, %v600
        %v602 = vpop.f32.mrb[0].mxu0
        %603 = vmatprep.mubr.bf16.mxu0 0
        %604 = vmatmul.mubr.bf16.gmra.mrb[0].mxu0 %v386
        %v605 = vpop.f32.mrb[0].mxu0
        %v606 = vadd.f32 0.0, %v605
        %v607 = vpop.f32.mrb[0].mxu0
        %v608 = vpop.f32.mrb[0].mxu0
        %v609 = vadd.f32 0.0, %v608
        %v610 = vpop.f32.mrb[0].mxu0
        %611 = vdwg.mxu0
        %v612 = vld [vmem:[#allocation7] sm:$0x1]
        %v614 = vlaneseq
        %v615 = vshrl.u32 %v614, 7
        %v616 = vsub.s32 0, %v615
        %v617 = vrot.slane %v612, %v616
        %v619 = vmul.f32 %v486, %v617
        %v620 = vmul.f32 %v489, %v617
        %v621 = vmul.f32 %v494, %v617
        %v622 = vmul.f32 %v497, %v617
        %v623 = vmul.f32 %v502, %v617
        %v624 = vmul.f32 %v505, %v617
        %v625 = vmul.f32 %v510, %v617
        %v626 = vmul.f32 %v513, %v617
        %v627 = vmul.f32 %v518, %v617
        %v628 = vmul.f32 %v521, %v617
        %v629 = vmul.f32 %v526, %v617
        %v630 = vmul.f32 %v529, %v617
        %v631 = vmul.f32 %v534, %v617
        %v632 = vmul.f32 %v537, %v617
        %v633 = vmul.f32 %v542, %v617
        %v634 = vmul.f32 %v545, %v617
        %v635 = vmul.f32 %v550, %v617
        %v636 = vmul.f32 %v553, %v617
        %v637 = vmul.f32 %v558, %v617
        %v638 = vmul.f32 %v561, %v617
        %v639 = vmul.f32 %v566, %v617
        %v640 = vmul.f32 %v569, %v617
        %v641 = vmul.f32 %v574, %v617
        %v642 = vmul.f32 %v577, %v617
        %v643 = vmul.f32 %v582, %v617
        %v644 = vmul.f32 %v585, %v617
        %v645 = vmul.f32 %v590, %v617
        %v646 = vmul.f32 %v593, %v617
        %v647 = vmul.f32 %v598, %v617
        %v648 = vmul.f32 %v601, %v617
        %v649 = vmul.f32 %v606, %v617
        %v650 = vmul.f32 %v609, %v617
        %v651 = vld [vmem:[#allocation8] sm:$0x1]
        %v653 = vlaneseq
        %v654 = vshrl.u32 %v653, 7
        %v655 = vsub.s32 0, %v654
        %v656 = vrot.slane %v651, %v655
        %v658 = vadd.f32 %v619, %v656
        %v659 = vadd.f32 %v620, %v656
        %v660 = vadd.f32 %v621, %v656
        %v661 = vadd.f32 %v622, %v656
        %v662 = vadd.f32 %v623, %v656
        %v663 = vadd.f32 %v624, %v656
        %v664 = vadd.f32 %v625, %v656
        %v665 = vadd.f32 %v626, %v656
        %v666 = vadd.f32 %v627, %v656
        %v667 = vadd.f32 %v628, %v656
        %v668 = vadd.f32 %v629, %v656
        %v669 = vadd.f32 %v630, %v656
        %v670 = vadd.f32 %v631, %v656
        %v671 = vadd.f32 %v632, %v656
        %v672 = vadd.f32 %v633, %v656
        %v673 = vadd.f32 %v634, %v656
        %v674 = vadd.f32 %v635, %v656
        %v675 = vadd.f32 %v636, %v656
        %v676 = vadd.f32 %v637, %v656
        %v677 = vadd.f32 %v638, %v656
        %v678 = vadd.f32 %v639, %v656
        %v679 = vadd.f32 %v640, %v656
        %v680 = vadd.f32 %v641, %v656
        %v681 = vadd.f32 %v642, %v656
        %v682 = vadd.f32 %v643, %v656
        %v683 = vadd.f32 %v644, %v656
        %v684 = vadd.f32 %v645, %v656
        %v685 = vadd.f32 %v646, %v656
        %v686 = vadd.f32 %v647, %v656
        %v687 = vadd.f32 %v648, %v656
        %v688 = vadd.f32 %v649, %v656
        %v689 = vadd.f32 %v650, %v656
        %v690 = vmax.f32 %v658, 0.0
        %v691 = vmax.f32 %v659, 0.0
        %v692 = vmax.f32 %v660, 0.0
        %v693 = vmax.f32 %v661, 0.0
        %v694 = vmax.f32 %v662, 0.0
        %v695 = vmax.f32 %v663, 0.0
        %v696 = vmax.f32 %v664, 0.0
        %v697 = vmax.f32 %v665, 0.0
        %v698 = vmax.f32 %v666, 0.0
        %v699 = vmax.f32 %v667, 0.0
        %v700 = vmax.f32 %v668, 0.0
        %v701 = vmax.f32 %v669, 0.0
        %v702 = vmax.f32 %v670, 0.0
        %v703 = vmax.f32 %v671, 0.0
        %v704 = vmax.f32 %v672, 0.0
        %v705 = vmax.f32 %v673, 0.0
        %v706 = vmax.f32 %v674, 0.0
        %v707 = vmax.f32 %v675, 0.0
        %v708 = vmax.f32 %v676, 0.0
        %v709 = vmax.f32 %v677, 0.0
        %v710 = vmax.f32 %v678, 0.0
        %v711 = vmax.f32 %v679, 0.0
        %v712 = vmax.f32 %v680, 0.0
        %v713 = vmax.f32 %v681, 0.0
        %v714 = vmax.f32 %v682, 0.0
        %v715 = vmax.f32 %v683, 0.0
        %v716 = vmax.f32 %v684, 0.0
        %v717 = vmax.f32 %v685, 0.0
        %v718 = vmax.f32 %v686, 0.0
        %v719 = vmax.f32 %v687, 0.0
        %v720 = vmax.f32 %v688, 0.0
        %v721 = vmax.f32 %v689, 0.0
        %v722 = vpack.c.bf16 %v691, %v690
        %v723 = vpack.c.bf16 %v693, %v692
        %v724 = vpack.c.bf16 %v695, %v694
        %v725 = vpack.c.bf16 %v697, %v696
        %v726 = vpack.c.bf16 %v699, %v698
        %v727 = vpack.c.bf16 %v701, %v700
        %v728 = vpack.c.bf16 %v703, %v702
        %v729 = vpack.c.bf16 %v705, %v704
        %v730 = vpack.c.bf16 %v707, %v706
        %v731 = vpack.c.bf16 %v709, %v708
        %v732 = vpack.c.bf16 %v711, %v710
        %v733 = vpack.c.bf16 %v713, %v712
        %v734 = vpack.c.bf16 %v715, %v714
        %v735 = vpack.c.bf16 %v717, %v716
        %v736 = vpack.c.bf16 %v719, %v718
        %v737 = vpack.c.bf16 %v721, %v720
        %v754 = vunpack.c.l.b16 %v722
        %v755 = vunpack.c.h.b16 %v722
        %v756 = vunpack.c.l.b16 %v723
        %v757 = vunpack.c.h.b16 %v723
        %v758 = vunpack.c.l.b16 %v724
        %v759 = vunpack.c.h.b16 %v724
        %v760 = vunpack.c.l.b16 %v725
        %v761 = vunpack.c.h.b16 %v725
        %v762 = vunpack.c.l.b16 %v726
        %v763 = vunpack.c.h.b16 %v726
        %v764 = vunpack.c.l.b16 %v727
        %v765 = vunpack.c.h.b16 %v727
        %v766 = vunpack.c.l.b16 %v728
        %v767 = vunpack.c.h.b16 %v728
        %v768 = vunpack.c.l.b16 %v729
        %v769 = vunpack.c.h.b16 %v729
        %v770 = vunpack.c.l.b16 %v730
        %v771 = vunpack.c.h.b16 %v730
        %v772 = vunpack.c.l.b16 %v731
        %v773 = vunpack.c.h.b16 %v731
        %v774 = vunpack.c.l.b16 %v732
        %v775 = vunpack.c.h.b16 %v732
        %v776 = vunpack.c.l.b16 %v733
        %v777 = vunpack.c.h.b16 %v733
        %v778 = vunpack.c.l.b16 %v734
        %v779 = vunpack.c.h.b16 %v734
        %v780 = vunpack.c.l.b16 %v735
        %v781 = vunpack.c.h.b16 %v735
        %v782 = vunpack.c.l.b16 %v736
        %v783 = vunpack.c.h.b16 %v736
        %v784 = vunpack.c.l.b16 %v737
        %v785 = vunpack.c.h.b16 %v737
        %v786 = vpack.c.b16 %v754, %v754
        %v787 = vpack.c.b16 %v755, %v755
        %v788 = vpack.c.b16 %v756, %v756
        %v789 = vpack.c.b16 %v757, %v757
        %v790 = vpack.c.b16 %v758, %v758
        %v791 = vpack.c.b16 %v759, %v759
        %v792 = vpack.c.b16 %v760, %v760
        %v793 = vpack.c.b16 %v761, %v761
        %v794 = vpack.c.b16 %v762, %v762
        %v795 = vpack.c.b16 %v763, %v763
        %v796 = vpack.c.b16 %v764, %v764
        %v797 = vpack.c.b16 %v765, %v765
        %v798 = vpack.c.b16 %v766, %v766
        %v799 = vpack.c.b16 %v767, %v767
        %v800 = vpack.c.b16 %v768, %v768
        %v801 = vpack.c.b16 %v769, %v769
        %v802 = vpack.c.b16 %v770, %v770
        %v803 = vpack.c.b16 %v771, %v771
        %v804 = vpack.c.b16 %v772, %v772
        %v805 = vpack.c.b16 %v773, %v773
        %v806 = vpack.c.b16 %v774, %v774
        %v807 = vpack.c.b16 %v775, %v775
        %v808 = vpack.c.b16 %v776, %v776
        %v809 = vpack.c.b16 %v777, %v777
        %v810 = vpack.c.b16 %v778, %v778
        %v811 = vpack.c.b16 %v779, %v779
        %v812 = vpack.c.b16 %v780, %v780
        %v813 = vpack.c.b16 %v781, %v781
        %v814 = vpack.c.b16 %v782, %v782
        %v815 = vpack.c.b16 %v783, %v783
        %v816 = vpack.c.b16 %v784, %v784
        %v817 = vpack.c.b16 %v785, %v785
        %850 = vst [vmem:[%s255] sm:$0xf] %v786
        %851 = vst [vmem:[%s255 + $0x4] sm:$0xf] %v787
        %852 = vst [vmem:[%s255 + $0x8] sm:$0xf] %v788
        %853 = vst [vmem:[%s255 + $0xc] sm:$0xf] %v789
        %854 = vst [vmem:[%s255 + $0x10] sm:$0xf] %v790
        %855 = vst [vmem:[%s255 + $0x14] sm:$0xf] %v791
        %856 = vst [vmem:[%s255 + $0x18] sm:$0xf] %v792
        %857 = vst [vmem:[%s255 + $0x1c] sm:$0xf] %v793
        %858 = vst [vmem:[%s255 + $0x20] sm:$0xf] %v794
        %859 = vst [vmem:[%s255 + $0x24] sm:$0xf] %v795
        %860 = vst [vmem:[%s255 + $0x28] sm:$0xf] %v796
        %861 = vst [vmem:[%s255 + $0x2c] sm:$0xf] %v797
        %862 = vst [vmem:[%s255 + $0x30] sm:$0xf] %v798
        %863 = vst [vmem:[%s255 + $0x34] sm:$0xf] %v799
        %864 = vst [vmem:[%s255 + $0x38] sm:$0xf] %v800
        %865 = vst [vmem:[%s255 + $0x3c] sm:$0xf] %v801
        %866 = vst [vmem:[%s255 + $0x40] sm:$0xf] %v802
        %867 = vst [vmem:[%s255 + $0x44] sm:$0xf] %v803
        %868 = vst [vmem:[%s255 + $0x48] sm:$0xf] %v804
        %869 = vst [vmem:[%s255 + $0x4c] sm:$0xf] %v805
        %870 = vst [vmem:[%s255 + $0x50] sm:$0xf] %v806
        %871 = vst [vmem:[%s255 + $0x54] sm:$0xf] %v807
        %872 = vst [vmem:[%s255 + $0x58] sm:$0xf] %v808
        %873 = vst [vmem:[%s255 + $0x5c] sm:$0xf] %v809
        %874 = vst [vmem:[%s255 + $0x60] sm:$0xf] %v810
        %875 = vst [vmem:[%s255 + $0x64] sm:$0xf] %v811
        %876 = vst [vmem:[%s255 + $0x68] sm:$0xf] %v812
        %877 = vst [vmem:[%s255 + $0x6c] sm:$0xf] %v813
        %878 = vst [vmem:[%s255 + $0x70] sm:$0xf] %v814
        %879 = vst [vmem:[%s255 + $0x74] sm:$0xf] %v815
        %880 = vst [vmem:[%s255 + $0x78] sm:$0xf] %v816
        %881 = vst [vmem:[%s255 + $0x7c] sm:$0xf] %v817
        %s882 = sand.u32 %s120, 1
        %s883 = scalar_lea.sflag [#allocation4], %s882
        %s884 = sand.u32 %s120, 1
        %s885 = smul.addr %s884, 128
        %s886 = scalar_lea.vmem [#allocation10], %s885
        // Predicated region
        $region53: #{tpu_custom_call.1} parent=35 // pred_check
          %p887 = pneg %p130
        $region54: #{tpu_custom_call.1} parent=35 // pred_check_branch
          %889 = sbr.rel (%p887) target = $region56
        $region55: #{tpu_custom_call.1} parent=35 // pred_region
          %s890 = smul.u32 32, %s23
          %s892 = ssub.s32 2048, 2048
          %893 = vsyncadd %s883, %s892
          %s894 = smul.addr %s890, 64
          %s895 = scalar_lea.hbm %s4, %s894
          %s896 = sshll.u32 %s886, 4
          %s897 = int_to_ptr.vmem [resolvable:$true] %s896
          %902 = dma.vmem_to_hbm [thread:$0]  %s897, 2048, %s895, %s883, 64, 64, 4
        $region56: #{tpu_custom_call.1} parent=35 // pred_fallthru
          _
      $region36: #{tpu_custom_call.1} parent=5 // pred_fallthru
        _
      %p903 = scmp.le.s32.totalorder 2, %s18
      // Predicated region
      $region57: #{tpu_custom_call.1} parent=5 // pred_check
        %p904 = pneg %p903
      $region58: #{tpu_custom_call.1} parent=5 // pred_check_branch
        %906 = sbr.rel (%p904) target = $region60
      $region59: #{tpu_custom_call.1} parent=5 // pred_region
        %s907 = ssub.s32 %s18, 2
        // Predicated region
        $region61: #{tpu_custom_call.1} parent=59 // pred_check
          %p908 = pneg %p136
        $region62: #{tpu_custom_call.1} parent=59 // pred_check_branch
          %910 = sbr.rel (%p908) target = $region64
        $region63: #{tpu_custom_call.1} parent=59 // pred_region
          %s911 = sand.u32 %s121, 1
          %s912 = scalar_lea.sflag [#allocation4], %s911
          %s913 = sand.u32 %s121, 1
          %s914 = smul.addr %s913, 128
          %s915 = scalar_lea.vmem [#allocation10], %s914
          %916 = dma.done %s912, 2048
        $region64: #{tpu_custom_call.1} parent=59 // pred_fallthru
          _
      $region60: #{tpu_custom_call.1} parent=5 // pred_fallthru
        _
    $region6: #{tpu_custom_call.1} parent=1 // loop_footer
      %s22 = sadd.s32 1, %s18
    $region7: #{tpu_custom_call.1} parent=1 // loop_footer_branch
      %17 = sbr.rel target = $region3
    $region8: #{tpu_custom_call.1} parent=1 // loop_exit
      _
    %917 = vsyncpa [#allocation3], 1
    %s918 = scalar_lea.sflag [#allocation3], 1
    %919 = vsyncpa %s918, 1
    %920 = vsyncpa [#allocation6], 1
    %921 = vsyncpa [#allocation9], 1
    %922 = vsyncpa [#allocation4], 1
    %s923 = scalar_lea.sflag [#allocation4], 1
    %924 = vsyncpa %s923, 1

</llo_original>
